<compile_context>
chip_gen: v7x
topology: tpu7x:2x2x1
jax: 0.10.0
libtpu: 0.0.40
codegen_flags: <defaults>
</compile_context>

<pallas_src>
import functools

import jax
import jax.numpy as jnp
from jax.experimental import pallas as pl
from jax.experimental.pallas import tpu as pltpu


def _nll_partial_kernel(pred_ref, hot_ref, out_ref, *, num_hot):
    """Per-tile partial sums of the gathered log-probabilities.

    pred_ref : (rows_tile, L) pred values, lane-packed (L = num_hot * C).
    hot_ref  : (rows_tile, num_hot) int32 hot-lane index per packed sub-row;
               -1 marks padding rows (matches no lane).
    out_ref  : (1, 1, L) f32 lane-wise partial sums for this tile.
    """
    pred = pred_ref[...].astype(jnp.float32)            # upcast in vregs only
    rows, lanes = pred.shape
    lane_id = jax.lax.broadcasted_iota(jnp.int32, (rows, lanes), dimension=1)
    hot = hot_ref[...]                                   # (rows, num_hot)
    mask = lane_id == hot[:, 0:1]
    for p in range(1, num_hot):                          # small static unroll (<=16)
        mask = jnp.logical_or(mask, lane_id == hot[:, p:p + 1])
    picked = jnp.where(mask, pred, 0.0)                  # cheaper than one-hot cast + mul
    # Sublane-only reduce here; the cheap cross-lane / cross-tile finish runs
    # in the wrapper on the tiny partials array.
    out_ref[...] = jnp.sum(picked, axis=0, keepdims=True).reshape(1, 1, lanes)


def _round_up(x, m):
    return (x + m - 1) // m * m


def nll_loss_pallas(pred, target, trans_feat=None, *, max_tile_bytes=4 * 1024 * 1024):
    """Mean NLL loss: -(1/B) * sum_i pred[i, target[i]]. trans_feat is ignored."""
    del trans_feat
    B, C = pred.shape
    target = target.astype(jnp.int32)
    itemsize = jnp.dtype(pred.dtype).itemsize

    # Pack P rows per 128-lane row so lanes are (nearly) fully used when C << 128.
    # Cap P to bound the static unroll of hot-lane compares in the kernel.
    P = max(1, min(128 // C, 16))
    L = P * C

    # Hot lane index inside the packed row for every original row.
    row_ids = jnp.arange(B, dtype=jnp.int32)
    hot = (row_ids % P) * C + target                     # (B,)

    R = -(-B // P)                                       # packed rows = ceil(B / P)

    # Tile rows: big enough to approach the HBM roofline, small enough that
    # double-buffered input tiles stay well under v7x's VMEM budget.
    rows_cap = max(8, (max_tile_bytes // (L * itemsize)) // 8 * 8)
    base_tile = min(1024, rows_cap)
    if R <= base_tile:
        rows_tile = R            # single tile: block == full dims, no row padding
        R_pad = R
    else:
        rows_tile = base_tile    # multiple of 8 sublanes
        R_pad = _round_up(R, rows_tile)

    # Pad the flat batch so it reshapes exactly into (R_pad, L) / (R_pad, P).
    B_pad = R_pad * P
    if B_pad > B:
        pad = B_pad - B
        pred = jnp.concatenate([pred, jnp.zeros((pad, C), dtype=pred.dtype)], axis=0)
        hot = jnp.concatenate([hot, jnp.full((pad,), -1, dtype=jnp.int32)], axis=0)

    pred_packed = pred.reshape(R_pad, L)   # contiguous reshape: free relabel, no copy
    hot_packed = hot.reshape(R_pad, P)

    num_tiles = R_pad // rows_tile

    partials = pl.pallas_call(
        functools.partial(_nll_partial_kernel, num_hot=P),
        out_shape=jax.ShapeDtypeStruct((num_tiles, 1, L), jnp.float32),
        grid_spec=pltpu.PrefetchScalarGridSpec(
            num_scalar_prefetch=0,
            grid=(num_tiles,),
            in_specs=[
                pl.BlockSpec((rows_tile, L), lambda i: (i, 0)),
                pl.BlockSpec((rows_tile, P), lambda i: (i, 0)),
            ],
            out_specs=pl.BlockSpec((1, 1, L), lambda i: (i, 0, 0)),
        ),
        compiler_params=pltpu.CompilerParams(
            dimension_semantics=("parallel",),
        ),
    )(pred_packed, hot_packed)

    # Final reduce + mean over the tiny (num_tiles, 1, L) partials array.
    return -jnp.sum(partials) / jnp.float32(B)


if __name__ == "__main__":
    key = jax.random.PRNGKey(0)
    k1, k2 = jax.random.split(key, 2)

    B, C = 8, 16  # small batch / num_classes (ModelNet-like classification head)
    logits = jax.random.normal(k1, (B, C), dtype=jnp.float32)
    pred = jax.nn.log_softmax(logits, axis=-1)           # log-probabilities, like model output
    target = jax.random.randint(k2, (B,), 0, C, dtype=jnp.int32)
    trans_feat = jnp.zeros((B, 3, 3), dtype=jnp.float32)  # unused, mirrors module signature

    loss = nll_loss_pallas(pred, target, trans_feat)
    jax.block_until_ready(loss)

    # Reference check (plain JAX == F.nll_loss(reduction='mean') semantics)
    ref = -jnp.mean(pred[jnp.arange(B), target])
    assert jnp.allclose(loss, ref, rtol=1e-5, atol=1e-6), (loss, ref)

    # bf16 inputs stream without a wrapper-side f32 upcast (upcast happens in vregs).
    pred_bf16 = pred.astype(jnp.bfloat16)
    loss_bf16 = nll_loss_pallas(pred_bf16, target)
    jax.block_until_ready(loss_bf16)
    ref_bf16 = -jnp.mean(pred_bf16.astype(jnp.float32)[jnp.arange(B), target])
    assert jnp.allclose(loss_bf16, ref_bf16, rtol=1e-3, atol=1e-3), (loss_bf16, ref_bf16)

    print("KERNEL_OK")
</pallas_src>

<mosaic_0001>
module attributes {stable_mosaic.version = 11 : i64} {
  func.func @_nll_partial_kernel(%arg0: i32, %arg1: memref<1x128xf32, #tpu.memory_space<vmem>>, %arg2: memref<1x8xi32, #tpu.memory_space<vmem>>, %arg3: memref<1x1x128xf32, #tpu.memory_space<vmem>>) attributes {dimension_semantics = [#tpu.dimension_semantics<parallel>], iteration_bounds = array<i64: 1>, scalar_prefetch = 0 : i64, scratch_operands = 0 : i64, tpu.core_type = #tpu.core_type<tc>, window_params = [{transform_indices = @transform_0, window_bounds = array<i64: 1, 128>}, {transform_indices = @transform_1, window_bounds = array<i64: 1, 8>}, {transform_indices = @transform_2, window_bounds = array<i64: 1, 1, 128>}]} {
    %c0 = arith.constant 0 : index
    %c0_0 = arith.constant 0 : index
    %0 = vector.load %arg1[%c0, %c0_0] : memref<1x128xf32, #tpu.memory_space<vmem>>, vector<1x128xf32>
    %1 = tpu.iota {dimensions = array<i32: 1>} : vector<1x128xi32>
    %c0_1 = arith.constant 0 : index
    %c0_2 = arith.constant 0 : index
    %2 = vector.load %arg2[%c0_1, %c0_2] : memref<1x8xi32, #tpu.memory_space<vmem>>, vector<1x8xi32>
    %3 = vector.extract_strided_slice %2 {offsets = [0, 0], sizes = [1, 1], strides = [1, 1]} : vector<1x8xi32> to vector<1x1xi32>
    %4 = vector.broadcast %3 : vector<1x1xi32> to vector<1x128xi32>
    %5 = arith.cmpi eq, %1, %4 : vector<1x128xi32>
    %6 = vector.extract_strided_slice %2 {offsets = [0, 1], sizes = [1, 1], strides = [1, 1]} : vector<1x8xi32> to vector<1x1xi32>
    %7 = vector.broadcast %6 : vector<1x1xi32> to vector<1x128xi32>
    %8 = arith.cmpi eq, %1, %7 : vector<1x128xi32>
    %9 = arith.ori %5, %8 : vector<1x128xi1>
    %10 = vector.extract_strided_slice %2 {offsets = [0, 2], sizes = [1, 1], strides = [1, 1]} : vector<1x8xi32> to vector<1x1xi32>
    %11 = vector.broadcast %10 : vector<1x1xi32> to vector<1x128xi32>
    %12 = arith.cmpi eq, %1, %11 : vector<1x128xi32>
    %13 = arith.ori %9, %12 : vector<1x128xi1>
    %14 = vector.extract_strided_slice %2 {offsets = [0, 3], sizes = [1, 1], strides = [1, 1]} : vector<1x8xi32> to vector<1x1xi32>
    %15 = vector.broadcast %14 : vector<1x1xi32> to vector<1x128xi32>
    %16 = arith.cmpi eq, %1, %15 : vector<1x128xi32>
    %17 = arith.ori %13, %16 : vector<1x128xi1>
    %18 = vector.extract_strided_slice %2 {offsets = [0, 4], sizes = [1, 1], strides = [1, 1]} : vector<1x8xi32> to vector<1x1xi32>
    %19 = vector.broadcast %18 : vector<1x1xi32> to vector<1x128xi32>
    %20 = arith.cmpi eq, %1, %19 : vector<1x128xi32>
    %21 = arith.ori %17, %20 : vector<1x128xi1>
    %22 = vector.extract_strided_slice %2 {offsets = [0, 5], sizes = [1, 1], strides = [1, 1]} : vector<1x8xi32> to vector<1x1xi32>
    %23 = vector.broadcast %22 : vector<1x1xi32> to vector<1x128xi32>
    %24 = arith.cmpi eq, %1, %23 : vector<1x128xi32>
    %25 = arith.ori %21, %24 : vector<1x128xi1>
    %26 = vector.extract_strided_slice %2 {offsets = [0, 6], sizes = [1, 1], strides = [1, 1]} : vector<1x8xi32> to vector<1x1xi32>
    %27 = vector.broadcast %26 : vector<1x1xi32> to vector<1x128xi32>
    %28 = arith.cmpi eq, %1, %27 : vector<1x128xi32>
    %29 = arith.ori %25, %28 : vector<1x128xi1>
    %30 = vector.extract_strided_slice %2 {offsets = [0, 7], sizes = [1, 1], strides = [1, 1]} : vector<1x8xi32> to vector<1x1xi32>
    %31 = vector.broadcast %30 : vector<1x1xi32> to vector<1x128xi32>
    %32 = arith.cmpi eq, %1, %31 : vector<1x128xi32>
    %33 = arith.ori %29, %32 : vector<1x128xi1>
    %cst = arith.constant 0.000000e+00 : f32
    %34 = vector.broadcast %cst : f32 to vector<1x128xf32>
    %35 = arith.select %33, %0, %34 : vector<1x128xi1>, vector<1x128xf32>
    %cst_3 = arith.constant dense<0.000000e+00> : vector<128xf32>
    %36 = vector.multi_reduction <add>, %35, %cst_3 [0] : vector<1x128xf32> to vector<128xf32>
    %37 = vector.shape_cast %36 : vector<128xf32> to vector<1x128xf32>
    %38 = vector.shape_cast %37 : vector<1x128xf32> to vector<1x1x128xf32>
    %c0_4 = arith.constant 0 : index
    %c0_5 = arith.constant 0 : index
    %c0_6 = arith.constant 0 : index
    %39 = vector.load %arg3[%c0_4, %c0_5, %c0_6] : memref<1x1x128xf32, #tpu.memory_space<vmem>>, vector<1x1x128xf32>
    tpu.vector_store %arg3[%c0_4, %c0_5, %c0_6], %38 {strides = array<i32>} : memref<1x1x128xf32, #tpu.memory_space<vmem>>, vector<1x1x128xf32>,
    return
  }
  func.func @transform_0(%arg0: i32) -> (i32, i32) {
    %c0_i32 = arith.constant 0 : i32
    %c0_i32_0 = arith.constant 0 : i32
    return %arg0, %c0_i32 : i32, i32
  }
  func.func @transform_1(%arg0: i32) -> (i32, i32) {
    %c0_i32 = arith.constant 0 : i32
    %c0_i32_0 = arith.constant 0 : i32
    return %arg0, %c0_i32 : i32, i32
  }
  func.func @transform_2(%arg0: i32) -> (i32, i32, i32) {
    %c0_i32 = arith.constant 0 : i32
    %c0_i32_0 = arith.constant 0 : i32
    %c0_i32_1 = arith.constant 0 : i32
    return %arg0, %c0_i32, %c0_i32_0 : i32, i32, i32
  }
}

</mosaic_0001>

<llo_original>
// kernel: tpu_custom_call.1
$region0: #{tpu_custom_call.1}
  #allocation0 [shape = 'u32[]', space=smem, size = 0x4, offset = 0x4, fixed_abs, tag = 'smem constant byte address 0x4 - core index']
  #allocation1 [shape = 'u32[144,128]{1,0:T(1,128)}', space=vmem, size = 0x12000, scoped, tag = 'internal scratch']
  %s0 = inlined_call_operand.hbm [shape: f32[1,128], index: 0, kind: input, shape index: {}]
  %s1 = inlined_call_operand.vmem [shape: s32[1,8], index: 1, kind: input, shape index: {}]
  %s2 = inlined_call_operand.hbm [shape: f32[1,1,128], index: 2, kind: output, shape index: {}]
  %s3 = sld [smem:[#allocation0]]
  $region22: #{tpu_custom_call.1} parent=0
    _
  %s5 = ssub.s32 1, %s3
  %s6 = scalar_select 0, %s5, %s3
  $region1: #{tpu_custom_call.1} parent=0
    #allocation2 [shape = 'u8[512]{0}', space=vmem, size = 0x400, scoped, tag = 'input window, operand 0, single buffered']
    #allocation3 [shape = 's32[1]{0}', space=sflag, size = 0x4, scoped, tag = 'scoped memory for tpu_custom_call.1']
    #allocation4 [shape = 's32[1]{0}', space=sflag, size = 0x4, scoped, tag = 'scoped memory for tpu_custom_call.1']
    #allocation5 [shape = 'u8[512]{0}', space=vmem, size = 0x400, scoped, tag = 'output window, operand 0, single buffered']
    %7 = vsyncpa [#allocation3], 0
    %8 = vsyncpa [#allocation4], 0
    // Predicated region
    $region2: #{tpu_custom_call.1} parent=1 // pred_check
      _
    $region3: #{tpu_custom_call.1} parent=1 // pred_check_branch
      %10 = sbr.rel (0) target = $region5
    $region4: #{tpu_custom_call.1} parent=1 // pred_region
      %s12 = ssub.s32 16, 16
      %13 = vsyncadd [#allocation3], %s12
      %s15 = sshll.u32 [#allocation2], 4
      %s16 = int_to_ptr.vmem [resolvable:$true] %s15
      %18 = dma.hbm_to_vmem [thread:$0]  %s0, 16, %s16, [#allocation3]
    $region5: #{tpu_custom_call.1} parent=1 // pred_fallthru
      _
    // Predicated region
    $region6: #{tpu_custom_call.1} parent=1 // pred_check
      _
    $region7: #{tpu_custom_call.1} parent=1 // pred_check_branch
      %20 = sbr.rel (0) target = $region9
    $region8: #{tpu_custom_call.1} parent=1 // pred_region
      _
    $region9: #{tpu_custom_call.1} parent=1 // pred_fallthru
      _
    // Predicated region
    $region10: #{tpu_custom_call.1} parent=1 // pred_check
      _
    $region11: #{tpu_custom_call.1} parent=1 // pred_check_branch
      %22 = sbr.rel (0) target = $region13
    $region12: #{tpu_custom_call.1} parent=1 // pred_region
      %23 = dma.done [#allocation3], 16
    $region13: #{tpu_custom_call.1} parent=1 // pred_fallthru
      _
    %v24 = vld [vmem:[#allocation2] sm:$0x1]
    %v25 = vlaneseq
    %v26 = vand.u32 %v25, 127
    %v27 = vld [vmem:[%s1] sm:$0x1]
    %28 = vset.pattern.permute.xlu0 0
    %29 = vperm.xlu0 %28, %v27
    %v30 = vpop.permute.xlu0 %29
    %v31 = vlaneseq
    %v32 = vshrl.u32 %v31, 7
    %v33 = vsub.s32 0, %v32
    %v34 = vrot.slane %v30, %v33
    %vm35 = vcmp.eq.s32.totalorder %v26, %v34
    %36 = vset.pattern.permute.xlu0 1
    %37 = vperm.xlu0 %36, %v27
    %v38 = vpop.permute.xlu0 %37
    %v39 = vlaneseq
    %v40 = vshrl.u32 %v39, 7
    %v41 = vsub.s32 0, %v40
    %v42 = vrot.slane %v38, %v41
    %vm43 = vcmp.eq.s32.totalorder %v26, %v42
    %vm44 = vmor %vm35, %vm43
    %45 = vset.pattern.permute.xlu0 2
    %46 = vperm.xlu0 %45, %v27
    %v47 = vpop.permute.xlu0 %46
    %v48 = vlaneseq
    %v49 = vshrl.u32 %v48, 7
    %v50 = vsub.s32 0, %v49
    %v51 = vrot.slane %v47, %v50
    %vm52 = vcmp.eq.s32.totalorder %v26, %v51
    %vm53 = vmor %vm44, %vm52
    %54 = vset.pattern.permute.xlu0 3
    %55 = vperm.xlu0 %54, %v27
    %v56 = vpop.permute.xlu0 %55
    %v57 = vlaneseq
    %v58 = vshrl.u32 %v57, 7
    %v59 = vsub.s32 0, %v58
    %v60 = vrot.slane %v56, %v59
    %vm61 = vcmp.eq.s32.totalorder %v26, %v60
    %vm62 = vmor %vm53, %vm61
    %63 = vset.pattern.permute.xlu0 4
    %64 = vperm.xlu0 %63, %v27
    %v65 = vpop.permute.xlu0 %64
    %v66 = vlaneseq
    %v67 = vshrl.u32 %v66, 7
    %v68 = vsub.s32 0, %v67
    %v69 = vrot.slane %v65, %v68
    %vm70 = vcmp.eq.s32.totalorder %v26, %v69
    %vm71 = vmor %vm62, %vm70
    %72 = vset.pattern.permute.xlu0 5
    %73 = vperm.xlu0 %72, %v27
    %v74 = vpop.permute.xlu0 %73
    %v75 = vlaneseq
    %v76 = vshrl.u32 %v75, 7
    %v77 = vsub.s32 0, %v76
    %v78 = vrot.slane %v74, %v77
    %vm79 = vcmp.eq.s32.totalorder %v26, %v78
    %vm80 = vmor %vm71, %vm79
    %81 = vset.pattern.permute.xlu0 6
    %82 = vperm.xlu0 %81, %v27
    %v83 = vpop.permute.xlu0 %82
    %v84 = vlaneseq
    %v85 = vshrl.u32 %v84, 7
    %v86 = vsub.s32 0, %v85
    %v87 = vrot.slane %v83, %v86
    %vm88 = vcmp.eq.s32.totalorder %v26, %v87
    %vm89 = vmor %vm80, %vm88
    %90 = vset.pattern.permute.xlu0 7
    %91 = vperm.xlu0 %90, %v27
    %v92 = vpop.permute.xlu0 %91
    %v93 = vlaneseq
    %v94 = vshrl.u32 %v93, 7
    %v95 = vsub.s32 0, %v94
    %v96 = vrot.slane %v92, %v95
    %vm97 = vcmp.eq.s32.totalorder %v26, %v96
    %vm98 = vmor %vm89, %vm97
    %v99 = vsel %vm98, %v24, 0.0
    %v100 = vadd.f32 %v99, 0.0
    %101 = vst [vmem:[#allocation5] sm:$0x1] %v100
    // Predicated region
    $region14: #{tpu_custom_call.1} parent=1 // pred_check
      _
    $region15: #{tpu_custom_call.1} parent=1 // pred_check_branch
      %103 = sbr.rel (0) target = $region17
    $region16: #{tpu_custom_call.1} parent=1 // pred_region
      %s105 = ssub.s32 16, 16
      %106 = vsyncadd [#allocation4], %s105
      %s108 = sshll.u32 [#allocation5], 4
      %s109 = int_to_ptr.vmem [resolvable:$true] %s108
      %111 = dma.vmem_to_hbm [thread:$0]  %s109, 16, %s2, [#allocation4]
    $region17: #{tpu_custom_call.1} parent=1 // pred_fallthru
      _
    // Predicated region
    $region18: #{tpu_custom_call.1} parent=1 // pred_check
      _
    $region19: #{tpu_custom_call.1} parent=1 // pred_check_branch
      %113 = sbr.rel (0) target = $region21
    $region20: #{tpu_custom_call.1} parent=1 // pred_region
      %114 = dma.done [#allocation4], 16
    $region21: #{tpu_custom_call.1} parent=1 // pred_fallthru
      _
    %115 = vsyncpa [#allocation3], 1
    %116 = vsyncpa [#allocation4], 1

</llo_original>
